<compile_context>
chip_gen: v5e
topology: v5e:2x2
jax: 0.10.0
libtpu: 0.0.40
codegen_flags: <defaults>
</compile_context>

<pallas_src>
import functools
import math

import jax
import jax.numpy as jnp
from jax import lax
from jax.experimental import pallas as pl
from jax.experimental.pallas import tpu as pltpu


# ------------------------------- fused kernel -------------------------------

def _mha_kernel(q_ref, k_ref, v_ref,
                wq_ref, bq_ref, wk_ref, bk_ref, wv_ref, bv_ref,
                wo_ref, bo_ref, o_ref, *, num_head, mxu_dtype):
    # Activation refs are (S, D) for one batch element (leading batch dim is
    # pl.Squeezed()).  Weights are (D, D), biases (1, D).
    S, D = q_ref.shape
    dh = D // num_head
    scale = 1.0 / math.sqrt(dh)

    def project(x_ref, w_ref, b_ref):
        return (jnp.dot(x_ref[...].astype(mxu_dtype),
                        w_ref[...].astype(mxu_dtype),
                        preferred_element_type=jnp.float32)
                + b_ref[...])

    Q = project(q_ref, wq_ref, bq_ref)   # (S, D) f32
    K = project(k_ref, wk_ref, bk_ref)
    V = project(v_ref, wv_ref, bv_ref)

    # Per-head attention on contiguous column blocks; the head's contribution
    # to the output projection is accumulated straight into a lane-dense
    # (S, D) accumulator -> no narrow (S, dh) stores, no concat/transpose.
    acc = jnp.zeros((S, D), jnp.float32)
    for h in range(num_head):          # static, small trip count
        lo = h * dh
        qh = (Q[:, lo:lo + dh] * scale).astype(mxu_dtype)   # fold 1/sqrt(dh) into Q
        kh = K[:, lo:lo + dh].astype(mxu_dtype)
        vh = V[:, lo:lo + dh].astype(mxu_dtype)

        # scores = qh @ kh^T, contracting on dh without forming k.T
        s = lax.dot_general(qh, kh, (((1,), (1,)), ((), ())),
                            preferred_element_type=jnp.float32)      # (S, S)
        # TODO(synk): optional `mask` argument of the PyTorch module is not
        # wired in (only the mask=None path is implemented).

        m = jnp.max(s, axis=-1, keepdims=True)
        p = jnp.exp(s - m)
        l = jnp.sum(p, axis=-1, keepdims=True)                       # (S, 1)
        # EUP approximate reciprocal + one Newton-Raphson step (cheap: only on
        # the (S,1) column) -> full precision without a VPU divide on (S,S).
        r = pl.reciprocal(l, approx=True)
        r = r * (2.0 - l * r)
        p = p * r

        ctx_h = jnp.dot(p.astype(mxu_dtype), vh,
                        preferred_element_type=jnp.float32)          # (S, dh)
        # out = sum_h ctx_h @ wo[h*dh:(h+1)*dh, :]   (row slice of wo, 8-aligned)
        acc = acc + jnp.dot(ctx_h.astype(mxu_dtype),
                            wo_ref[lo:lo + dh, :].astype(mxu_dtype),
                            preferred_element_type=jnp.float32)

    o_ref[...] = (acc + bo_ref[...]).astype(o_ref.dtype)


# ------------------------------ module wrapper ------------------------------

def multi_head_attention(q, k, v, params, num_head, *, mxu_dtype=jnp.float32):
    """Equivalent of Multi_Head_Attention.forward(q, k, v, mask=None).

    Set mxu_dtype=jnp.bfloat16 on v6e/v7x for 2x MXU throughput at realistic
    sizes (accumulation and softmax statistics stay in f32).
    """
    B, S, D = q.shape
    assert D % num_head == 0

    act_spec = pl.BlockSpec((pl.Squeezed(), S, D), lambda b: (b, 0, 0))
    w_spec = pl.BlockSpec((D, D), lambda b: (0, 0))
    b_spec = pl.BlockSpec((1, D), lambda b: (0, 0))

    kernel = functools.partial(_mha_kernel, num_head=num_head,
                               mxu_dtype=mxu_dtype)

    return pl.pallas_call(
        kernel,
        out_shape=jax.ShapeDtypeStruct((B, S, D), q.dtype),
        grid=(B,),
        in_specs=[act_spec, act_spec, act_spec,
                  w_spec, b_spec,      # wq, bq
                  w_spec, b_spec,      # wk, bk
                  w_spec, b_spec,      # wv, bv
                  w_spec, b_spec],     # wo, bo
        out_specs=act_spec,
        compiler_params=pltpu.CompilerParams(
            dimension_semantics=("parallel",)),
    )(q, k, v,
      params["wq"], params["bq"].reshape(1, D),
      params["wk"], params["bk"].reshape(1, D),
      params["wv"], params["bv"].reshape(1, D),
      params["wo"], params["bo"].reshape(1, D))


# ----------------------------- reference (plain JAX) -------------------------

def reference(q, k, v, params, num_head):
    B, S, D = q.shape
    dh = D // num_head

    def lin(x, w, b):
        return x @ w + b

    def split_heads(x):
        return x.reshape(B, S, num_head, dh).transpose(0, 2, 1, 3)

    Q = split_heads(lin(q, params["wq"], params["bq"]))
    K = split_heads(lin(k, params["wk"], params["bk"]))
    V = split_heads(lin(v, params["wv"], params["bv"]))
    scores = jnp.einsum("bhqd,bhkd->bhqk", Q, K) / math.sqrt(dh)
    p = jax.nn.softmax(scores, axis=-1)
    ctx = jnp.einsum("bhqk,bhkd->bhqd", p, V)
    ctx = ctx.transpose(0, 2, 1, 3).reshape(B, S, D)
    return lin(ctx, params["wo"], params["bo"])


# ----------------------------------- main ------------------------------------

if __name__ == "__main__":
    B, S, D, H = 2, 8, 32, 4  # batch, seq, dim_model, num_head

    key = jax.random.PRNGKey(0)
    ks = jax.random.split(key, 12)

    # nn.Linear-style init; weights stored as (in, out) so y = x @ w + b.
    bound = 1.0 / math.sqrt(D)
    params = {
        "wq": jax.random.uniform(ks[0], (D, D), jnp.float32, -bound, bound),
        "bq": jax.random.uniform(ks[1], (D,), jnp.float32, -bound, bound),
        "wk": jax.random.uniform(ks[2], (D, D), jnp.float32, -bound, bound),
        "bk": jax.random.uniform(ks[3], (D,), jnp.float32, -bound, bound),
        "wv": jax.random.uniform(ks[4], (D, D), jnp.float32, -bound, bound),
        "bv": jax.random.uniform(ks[5], (D,), jnp.float32, -bound, bound),
        "wo": jax.random.uniform(ks[6], (D, D), jnp.float32, -bound, bound),
        "bo": jax.random.uniform(ks[7], (D,), jnp.float32, -bound, bound),
    }

    q = jax.random.normal(ks[8], (B, S, D), jnp.float32)
    k = jax.random.normal(ks[9], (B, S, D), jnp.float32)
    v = jax.random.normal(ks[10], (B, S, D), jnp.float32)

    out = multi_head_attention(q, k, v, params, H)
    out = jax.block_until_ready(out)

    ref = reference(q, k, v, params, H)
    assert out.shape == (B, S, D)
    # Tolerance covers the EUP reciprocal (+Newton step) and f32 reassociation
    # from the per-head output-projection accumulation.
    assert jnp.allclose(out, ref, atol=1e-3, rtol=1e-3), "mismatch vs JAX reference"

    print("KERNEL_OK")
</pallas_src>

<mosaic_0001>
module attributes {stable_mosaic.version = 11 : i64} {
  func.func @_mha_kernel(%arg0: i32, %arg1: memref<1x8x32xf32, #tpu.memory_space<vmem>>, %arg2: memref<1x8x32xf32, #tpu.memory_space<vmem>>, %arg3: memref<1x8x32xf32, #tpu.memory_space<vmem>>, %arg4: memref<32x32xf32, #tpu.memory_space<vmem>>, %arg5: memref<1x32xf32, #tpu.memory_space<vmem>>, %arg6: memref<32x32xf32, #tpu.memory_space<vmem>>, %arg7: memref<1x32xf32, #tpu.memory_space<vmem>>, %arg8: memref<32x32xf32, #tpu.memory_space<vmem>>, %arg9: memref<1x32xf32, #tpu.memory_space<vmem>>, %arg10: memref<32x32xf32, #tpu.memory_space<vmem>>, %arg11: memref<1x32xf32, #tpu.memory_space<vmem>>, %arg12: memref<1x8x32xf32, #tpu.memory_space<vmem>>) attributes {dimension_semantics = [#tpu.dimension_semantics<parallel>], iteration_bounds = array<i64: 2>, scalar_prefetch = 0 : i64, scratch_operands = 0 : i64, tpu.core_type = #tpu.core_type<tc>, window_params = [{transform_indices = @transform_0, window_bounds = array<i64: 1, 8, 32>}, {transform_indices = @transform_1, window_bounds = array<i64: 1, 8, 32>}, {transform_indices = @transform_2, window_bounds = array<i64: 1, 8, 32>}, {pipeline_mode = #tpu.pipeline_mode<synchronous>, transform_indices = @transform_3, window_bounds = array<i64: 32, 32>}, {pipeline_mode = #tpu.pipeline_mode<synchronous>, transform_indices = @transform_4, window_bounds = array<i64: 1, 32>}, {pipeline_mode = #tpu.pipeline_mode<synchronous>, transform_indices = @transform_5, window_bounds = array<i64: 32, 32>}, {pipeline_mode = #tpu.pipeline_mode<synchronous>, transform_indices = @transform_6, window_bounds = array<i64: 1, 32>}, {pipeline_mode = #tpu.pipeline_mode<synchronous>, transform_indices = @transform_7, window_bounds = array<i64: 32, 32>}, {pipeline_mode = #tpu.pipeline_mode<synchronous>, transform_indices = @transform_8, window_bounds = array<i64: 1, 32>}, {pipeline_mode = #tpu.pipeline_mode<synchronous>, transform_indices = @transform_9, window_bounds = array<i64: 32, 32>}, {pipeline_mode = #tpu.pipeline_mode<synchronous>, transform_indices = @transform_10, window_bounds = array<i64: 1, 32>}, {transform_indices = @transform_11, window_bounds = array<i64: 1, 8, 32>}]} {
    %c0 = arith.constant 0 : index
    %c0_0 = arith.constant 0 : index
    %c0_1 = arith.constant 0 : index
    %0 = vector.load %arg1[%c0, %c0_0, %c0_1] : memref<1x8x32xf32, #tpu.memory_space<vmem>>, vector<1x8x32xf32>
    %1 = vector.shape_cast %0 : vector<1x8x32xf32> to vector<8x32xf32>
    %c0_2 = arith.constant 0 : index
    %c0_3 = arith.constant 0 : index
    %2 = vector.load %arg4[%c0_2, %c0_3] : memref<32x32xf32, #tpu.memory_space<vmem>>, vector<32x32xf32>
    %cst = arith.constant dense<0.000000e+00> : vector<8x32xf32>
    %3 = tpu.matmul %1, %2, %cst {dimension_numbers = #tpu.dot_dimension_numbers<[1], [0], [0], [1], [0, 0, 1, 1], [], []>} : vector<8x32xf32>, vector<32x32xf32>, vector<8x32xf32> -> vector<8x32xf32>
    %c0_4 = arith.constant 0 : index
    %c0_5 = arith.constant 0 : index
    %4 = vector.load %arg5[%c0_4, %c0_5] : memref<1x32xf32, #tpu.memory_space<vmem>>, vector<1x32xf32>
    %5 = vector.broadcast %4 : vector<1x32xf32> to vector<8x32xf32>
    %6 = arith.addf %3, %5 : vector<8x32xf32>
    %c0_6 = arith.constant 0 : index
    %c0_7 = arith.constant 0 : index
    %c0_8 = arith.constant 0 : index
    %7 = vector.load %arg2[%c0_6, %c0_7, %c0_8] : memref<1x8x32xf32, #tpu.memory_space<vmem>>, vector<1x8x32xf32>
    %8 = vector.shape_cast %7 : vector<1x8x32xf32> to vector<8x32xf32>
    %c0_9 = arith.constant 0 : index
    %c0_10 = arith.constant 0 : index
    %9 = vector.load %arg6[%c0_9, %c0_10] : memref<32x32xf32, #tpu.memory_space<vmem>>, vector<32x32xf32>
    %cst_11 = arith.constant dense<0.000000e+00> : vector<8x32xf32>
    %10 = tpu.matmul %8, %9, %cst_11 {dimension_numbers = #tpu.dot_dimension_numbers<[1], [0], [0], [1], [0, 0, 1, 1], [], []>} : vector<8x32xf32>, vector<32x32xf32>, vector<8x32xf32> -> vector<8x32xf32>
    %c0_12 = arith.constant 0 : index
    %c0_13 = arith.constant 0 : index
    %11 = vector.load %arg7[%c0_12, %c0_13] : memref<1x32xf32, #tpu.memory_space<vmem>>, vector<1x32xf32>
    %12 = vector.broadcast %11 : vector<1x32xf32> to vector<8x32xf32>
    %13 = arith.addf %10, %12 : vector<8x32xf32>
    %c0_14 = arith.constant 0 : index
    %c0_15 = arith.constant 0 : index
    %c0_16 = arith.constant 0 : index
    %14 = vector.load %arg3[%c0_14, %c0_15, %c0_16] : memref<1x8x32xf32, #tpu.memory_space<vmem>>, vector<1x8x32xf32>
    %15 = vector.shape_cast %14 : vector<1x8x32xf32> to vector<8x32xf32>
    %c0_17 = arith.constant 0 : index
    %c0_18 = arith.constant 0 : index
    %16 = vector.load %arg8[%c0_17, %c0_18] : memref<32x32xf32, #tpu.memory_space<vmem>>, vector<32x32xf32>
    %cst_19 = arith.constant dense<0.000000e+00> : vector<8x32xf32>
    %17 = tpu.matmul %15, %16, %cst_19 {dimension_numbers = #tpu.dot_dimension_numbers<[1], [0], [0], [1], [0, 0, 1, 1], [], []>} : vector<8x32xf32>, vector<32x32xf32>, vector<8x32xf32> -> vector<8x32xf32>
    %c0_20 = arith.constant 0 : index
    %c0_21 = arith.constant 0 : index
    %18 = vector.load %arg9[%c0_20, %c0_21] : memref<1x32xf32, #tpu.memory_space<vmem>>, vector<1x32xf32>
    %19 = vector.broadcast %18 : vector<1x32xf32> to vector<8x32xf32>
    %20 = arith.addf %17, %19 : vector<8x32xf32>
    %cst_22 = arith.constant 0.000000e+00 : f32
    %21 = vector.broadcast %cst_22 : f32 to vector<8x32xf32>
    %22 = vector.extract_strided_slice %6 {offsets = [0, 0], sizes = [8, 8], strides = [1, 1]} : vector<8x32xf32> to vector<8x8xf32>
    %cst_23 = arith.constant 0.353553385 : f32
    %23 = vector.broadcast %cst_23 : f32 to vector<8x8xf32>
    %24 = arith.mulf %22, %23 : vector<8x8xf32>
    %25 = vector.extract_strided_slice %13 {offsets = [0, 0], sizes = [8, 8], strides = [1, 1]} : vector<8x32xf32> to vector<8x8xf32>
    %26 = vector.extract_strided_slice %20 {offsets = [0, 0], sizes = [8, 8], strides = [1, 1]} : vector<8x32xf32> to vector<8x8xf32>
    %cst_24 = arith.constant dense<0.000000e+00> : vector<8x8xf32>
    %27 = tpu.matmul %24, %25, %cst_24 {dimension_numbers = #tpu.dot_dimension_numbers<[1], [1], [0], [0], [0, 0, 1, 0], [], []>} : vector<8x8xf32>, vector<8x8xf32>, vector<8x8xf32> -> vector<8x8xf32>
    %cst_25 = arith.constant dense<0xFF800000> : vector<8xf32>
    %28 = vector.multi_reduction <maximumf>, %27, %cst_25 [1] : vector<8x8xf32> to vector<8xf32>
    %29 = vector.shape_cast %28 : vector<8xf32> to vector<8x1xf32>
    %30 = vector.broadcast %29 : vector<8x1xf32> to vector<8x8xf32>
    %31 = arith.subf %27, %30 : vector<8x8xf32>
    %32 = math.exp %31 : vector<8x8xf32>
    %cst_26 = arith.constant dense<0.000000e+00> : vector<8xf32>
    %33 = vector.multi_reduction <add>, %32, %cst_26 [1] : vector<8x8xf32> to vector<8xf32>
    %34 = vector.shape_cast %33 : vector<8xf32> to vector<8x1xf32>
    %35 = tpu.reciprocal %34 {approx = true} : vector<8x1xf32> -> vector<8x1xf32>
    %36 = arith.mulf %34, %35 : vector<8x1xf32>
    %cst_27 = arith.constant 2.000000e+00 : f32
    %37 = vector.broadcast %cst_27 : f32 to vector<8x1xf32>
    %38 = arith.subf %37, %36 : vector<8x1xf32>
    %39 = arith.mulf %35, %38 : vector<8x1xf32>
    %40 = vector.broadcast %39 : vector<8x1xf32> to vector<8x8xf32>
    %41 = arith.mulf %32, %40 : vector<8x8xf32>
    %cst_28 = arith.constant dense<0.000000e+00> : vector<8x8xf32>
    %42 = tpu.matmul %41, %26, %cst_28 {dimension_numbers = #tpu.dot_dimension_numbers<[1], [0], [0], [1], [0, 0, 1, 1], [], []>} : vector<8x8xf32>, vector<8x8xf32>, vector<8x8xf32> -> vector<8x8xf32>
    %c0_29 = arith.constant 0 : index
    %c0_30 = arith.constant 0 : index
    %43 = vector.load %arg10[%c0_29, %c0_30] : memref<32x32xf32, #tpu.memory_space<vmem>>, vector<8x32xf32>
    %cst_31 = arith.constant dense<0.000000e+00> : vector<8x32xf32>
    %44 = tpu.matmul %42, %43, %cst_31 {dimension_numbers = #tpu.dot_dimension_numbers<[1], [0], [0], [1], [0, 0, 1, 1], [], []>} : vector<8x8xf32>, vector<8x32xf32>, vector<8x32xf32> -> vector<8x32xf32>
    %45 = arith.addf %21, %44 : vector<8x32xf32>
    %46 = vector.extract_strided_slice %6 {offsets = [0, 8], sizes = [8, 8], strides = [1, 1]} : vector<8x32xf32> to vector<8x8xf32>
    %cst_32 = arith.constant 0.353553385 : f32
    %47 = vector.broadcast %cst_32 : f32 to vector<8x8xf32>
    %48 = arith.mulf %46, %47 : vector<8x8xf32>
    %49 = vector.extract_strided_slice %13 {offsets = [0, 8], sizes = [8, 8], strides = [1, 1]} : vector<8x32xf32> to vector<8x8xf32>
    %50 = vector.extract_strided_slice %20 {offsets = [0, 8], sizes = [8, 8], strides = [1, 1]} : vector<8x32xf32> to vector<8x8xf32>
    %cst_33 = arith.constant dense<0.000000e+00> : vector<8x8xf32>
    %51 = tpu.matmul %48, %49, %cst_33 {dimension_numbers = #tpu.dot_dimension_numbers<[1], [1], [0], [0], [0, 0, 1, 0], [], []>} : vector<8x8xf32>, vector<8x8xf32>, vector<8x8xf32> -> vector<8x8xf32>
    %cst_34 = arith.constant dense<0xFF800000> : vector<8xf32>
    %52 = vector.multi_reduction <maximumf>, %51, %cst_34 [1] : vector<8x8xf32> to vector<8xf32>
    %53 = vector.shape_cast %52 : vector<8xf32> to vector<8x1xf32>
    %54 = vector.broadcast %53 : vector<8x1xf32> to vector<8x8xf32>
    %55 = arith.subf %51, %54 : vector<8x8xf32>
    %56 = math.exp %55 : vector<8x8xf32>
    %cst_35 = arith.constant dense<0.000000e+00> : vector<8xf32>
    %57 = vector.multi_reduction <add>, %56, %cst_35 [1] : vector<8x8xf32> to vector<8xf32>
    %58 = vector.shape_cast %57 : vector<8xf32> to vector<8x1xf32>
    %59 = tpu.reciprocal %58 {approx = true} : vector<8x1xf32> -> vector<8x1xf32>
    %60 = arith.mulf %58, %59 : vector<8x1xf32>
    %cst_36 = arith.constant 2.000000e+00 : f32
    %61 = vector.broadcast %cst_36 : f32 to vector<8x1xf32>
    %62 = arith.subf %61, %60 : vector<8x1xf32>
    %63 = arith.mulf %59, %62 : vector<8x1xf32>
    %64 = vector.broadcast %63 : vector<8x1xf32> to vector<8x8xf32>
    %65 = arith.mulf %56, %64 : vector<8x8xf32>
    %cst_37 = arith.constant dense<0.000000e+00> : vector<8x8xf32>
    %66 = tpu.matmul %65, %50, %cst_37 {dimension_numbers = #tpu.dot_dimension_numbers<[1], [0], [0], [1], [0, 0, 1, 1], [], []>} : vector<8x8xf32>, vector<8x8xf32>, vector<8x8xf32> -> vector<8x8xf32>
    %c8 = arith.constant 8 : index
    %c0_38 = arith.constant 0 : index
    %67 = vector.load %arg10[%c8, %c0_38] : memref<32x32xf32, #tpu.memory_space<vmem>>, vector<8x32xf32>
    %cst_39 = arith.constant dense<0.000000e+00> : vector<8x32xf32>
    %68 = tpu.matmul %66, %67, %cst_39 {dimension_numbers = #tpu.dot_dimension_numbers<[1], [0], [0], [1], [0, 0, 1, 1], [], []>} : vector<8x8xf32>, vector<8x32xf32>, vector<8x32xf32> -> vector<8x32xf32>
    %69 = arith.addf %45, %68 : vector<8x32xf32>
    %70 = vector.extract_strided_slice %6 {offsets = [0, 16], sizes = [8, 8], strides = [1, 1]} : vector<8x32xf32> to vector<8x8xf32>
    %cst_40 = arith.constant 0.353553385 : f32
    %71 = vector.broadcast %cst_40 : f32 to vector<8x8xf32>
    %72 = arith.mulf %70, %71 : vector<8x8xf32>
    %73 = vector.extract_strided_slice %13 {offsets = [0, 16], sizes = [8, 8], strides = [1, 1]} : vector<8x32xf32> to vector<8x8xf32>
    %74 = vector.extract_strided_slice %20 {offsets = [0, 16], sizes = [8, 8], strides = [1, 1]} : vector<8x32xf32> to vector<8x8xf32>
    %cst_41 = arith.constant dense<0.000000e+00> : vector<8x8xf32>
    %75 = tpu.matmul %72, %73, %cst_41 {dimension_numbers = #tpu.dot_dimension_numbers<[1], [1], [0], [0], [0, 0, 1, 0], [], []>} : vector<8x8xf32>, vector<8x8xf32>, vector<8x8xf32> -> vector<8x8xf32>
    %cst_42 = arith.constant dense<0xFF800000> : vector<8xf32>
    %76 = vector.multi_reduction <maximumf>, %75, %cst_42 [1] : vector<8x8xf32> to vector<8xf32>
    %77 = vector.shape_cast %76 : vector<8xf32> to vector<8x1xf32>
    %78 = vector.broadcast %77 : vector<8x1xf32> to vector<8x8xf32>
    %79 = arith.subf %75, %78 : vector<8x8xf32>
    %80 = math.exp %79 : vector<8x8xf32>
    %cst_43 = arith.constant dense<0.000000e+00> : vector<8xf32>
    %81 = vector.multi_reduction <add>, %80, %cst_43 [1] : vector<8x8xf32> to vector<8xf32>
    %82 = vector.shape_cast %81 : vector<8xf32> to vector<8x1xf32>
    %83 = tpu.reciprocal %82 {approx = true} : vector<8x1xf32> -> vector<8x1xf32>
    %84 = arith.mulf %82, %83 : vector<8x1xf32>
    %cst_44 = arith.constant 2.000000e+00 : f32
    %85 = vector.broadcast %cst_44 : f32 to vector<8x1xf32>
    %86 = arith.subf %85, %84 : vector<8x1xf32>
    %87 = arith.mulf %83, %86 : vector<8x1xf32>
    %88 = vector.broadcast %87 : vector<8x1xf32> to vector<8x8xf32>
    %89 = arith.mulf %80, %88 : vector<8x8xf32>
    %cst_45 = arith.constant dense<0.000000e+00> : vector<8x8xf32>
    %90 = tpu.matmul %89, %74, %cst_45 {dimension_numbers = #tpu.dot_dimension_numbers<[1], [0], [0], [1], [0, 0, 1, 1], [], []>} : vector<8x8xf32>, vector<8x8xf32>, vector<8x8xf32> -> vector<8x8xf32>
    %c16 = arith.constant 16 : index
    %c0_46 = arith.constant 0 : index
    %91 = vector.load %arg10[%c16, %c0_46] : memref<32x32xf32, #tpu.memory_space<vmem>>, vector<8x32xf32>
    %cst_47 = arith.constant dense<0.000000e+00> : vector<8x32xf32>
    %92 = tpu.matmul %90, %91, %cst_47 {dimension_numbers = #tpu.dot_dimension_numbers<[1], [0], [0], [1], [0, 0, 1, 1], [], []>} : vector<8x8xf32>, vector<8x32xf32>, vector<8x32xf32> -> vector<8x32xf32>
    %93 = arith.addf %69, %92 : vector<8x32xf32>
    %94 = vector.extract_strided_slice %6 {offsets = [0, 24], sizes = [8, 8], strides = [1, 1]} : vector<8x32xf32> to vector<8x8xf32>
    %cst_48 = arith.constant 0.353553385 : f32
    %95 = vector.broadcast %cst_48 : f32 to vector<8x8xf32>
    %96 = arith.mulf %94, %95 : vector<8x8xf32>
    %97 = vector.extract_strided_slice %13 {offsets = [0, 24], sizes = [8, 8], strides = [1, 1]} : vector<8x32xf32> to vector<8x8xf32>
    %98 = vector.extract_strided_slice %20 {offsets = [0, 24], sizes = [8, 8], strides = [1, 1]} : vector<8x32xf32> to vector<8x8xf32>
    %cst_49 = arith.constant dense<0.000000e+00> : vector<8x8xf32>
    %99 = tpu.matmul %96, %97, %cst_49 {dimension_numbers = #tpu.dot_dimension_numbers<[1], [1], [0], [0], [0, 0, 1, 0], [], []>} : vector<8x8xf32>, vector<8x8xf32>, vector<8x8xf32> -> vector<8x8xf32>
    %cst_50 = arith.constant dense<0xFF800000> : vector<8xf32>
    %100 = vector.multi_reduction <maximumf>, %99, %cst_50 [1] : vector<8x8xf32> to vector<8xf32>
    %101 = vector.shape_cast %100 : vector<8xf32> to vector<8x1xf32>
    %102 = vector.broadcast %101 : vector<8x1xf32> to vector<8x8xf32>
    %103 = arith.subf %99, %102 : vector<8x8xf32>
    %104 = math.exp %103 : vector<8x8xf32>
    %cst_51 = arith.constant dense<0.000000e+00> : vector<8xf32>
    %105 = vector.multi_reduction <add>, %104, %cst_51 [1] : vector<8x8xf32> to vector<8xf32>
    %106 = vector.shape_cast %105 : vector<8xf32> to vector<8x1xf32>
    %107 = tpu.reciprocal %106 {approx = true} : vector<8x1xf32> -> vector<8x1xf32>
    %108 = arith.mulf %106, %107 : vector<8x1xf32>
    %cst_52 = arith.constant 2.000000e+00 : f32
    %109 = vector.broadcast %cst_52 : f32 to vector<8x1xf32>
    %110 = arith.subf %109, %108 : vector<8x1xf32>
    %111 = arith.mulf %107, %110 : vector<8x1xf32>
    %112 = vector.broadcast %111 : vector<8x1xf32> to vector<8x8xf32>
    %113 = arith.mulf %104, %112 : vector<8x8xf32>
    %cst_53 = arith.constant dense<0.000000e+00> : vector<8x8xf32>
    %114 = tpu.matmul %113, %98, %cst_53 {dimension_numbers = #tpu.dot_dimension_numbers<[1], [0], [0], [1], [0, 0, 1, 1], [], []>} : vector<8x8xf32>, vector<8x8xf32>, vector<8x8xf32> -> vector<8x8xf32>
    %c24 = arith.constant 24 : index
    %c0_54 = arith.constant 0 : index
    %115 = vector.load %arg10[%c24, %c0_54] : memref<32x32xf32, #tpu.memory_space<vmem>>, vector<8x32xf32>
    %cst_55 = arith.constant dense<0.000000e+00> : vector<8x32xf32>
    %116 = tpu.matmul %114, %115, %cst_55 {dimension_numbers = #tpu.dot_dimension_numbers<[1], [0], [0], [1], [0, 0, 1, 1], [], []>} : vector<8x8xf32>, vector<8x32xf32>, vector<8x32xf32> -> vector<8x32xf32>
    %117 = arith.addf %93, %116 : vector<8x32xf32>
    %c0_56 = arith.constant 0 : index
    %c0_57 = arith.constant 0 : index
    %118 = vector.load %arg11[%c0_56, %c0_57] : memref<1x32xf32, #tpu.memory_space<vmem>>, vector<1x32xf32>
    %119 = vector.broadcast %118 : vector<1x32xf32> to vector<8x32xf32>
    %120 = arith.addf %117, %119 : vector<8x32xf32>
    %c0_58 = arith.constant 0 : index
    %c0_59 = arith.constant 0 : index
    %c0_60 = arith.constant 0 : index
    %121 = vector.load %arg12[%c0_58, %c0_59, %c0_60] : memref<1x8x32xf32, #tpu.memory_space<vmem>>, vector<1x8x32xf32>
    %122 = vector.shape_cast %121 : vector<1x8x32xf32> to vector<8x32xf32>
    %123 = vector.shape_cast %120 : vector<8x32xf32> to vector<1x8x32xf32>
    tpu.vector_store %arg12[%c0_58, %c0_59, %c0_60], %123 {strides = array<i32>} : memref<1x8x32xf32, #tpu.memory_space<vmem>>, vector<1x8x32xf32>,
    return
  }
  func.func @transform_0(%arg0: i32) -> (i32, i32, i32) {
    %c0_i32 = arith.constant 0 : i32
    %c0_i32_0 = arith.constant 0 : i32
    %c0_i32_1 = arith.constant 0 : i32
    return %arg0, %c0_i32, %c0_i32_0 : i32, i32, i32
  }
  func.func @transform_1(%arg0: i32) -> (i32, i32, i32) {
    %c0_i32 = arith.constant 0 : i32
    %c0_i32_0 = arith.constant 0 : i32
    %c0_i32_1 = arith.constant 0 : i32
    return %arg0, %c0_i32, %c0_i32_0 : i32, i32, i32
  }
  func.func @transform_2(%arg0: i32) -> (i32, i32, i32) {
    %c0_i32 = arith.constant 0 : i32
    %c0_i32_0 = arith.constant 0 : i32
    %c0_i32_1 = arith.constant 0 : i32
    return %arg0, %c0_i32, %c0_i32_0 : i32, i32, i32
  }
  func.func @transform_3(%arg0: i32) -> (i32, i32) {
    %c0_i32 = arith.constant 0 : i32
    %c0_i32_0 = arith.constant 0 : i32
    %c0_i32_1 = arith.constant 0 : i32
    return %c0_i32, %c0_i32_0 : i32, i32
  }
  func.func @transform_4(%arg0: i32) -> (i32, i32) {
    %c0_i32 = arith.constant 0 : i32
    %c0_i32_0 = arith.constant 0 : i32
    %c0_i32_1 = arith.constant 0 : i32
    return %c0_i32, %c0_i32_0 : i32, i32
  }
  func.func @transform_5(%arg0: i32) -> (i32, i32) {
    %c0_i32 = arith.constant 0 : i32
    %c0_i32_0 = arith.constant 0 : i32
    %c0_i32_1 = arith.constant 0 : i32
    return %c0_i32, %c0_i32_0 : i32, i32
  }
  func.func @transform_6(%arg0: i32) -> (i32, i32) {
    %c0_i32 = arith.constant 0 : i32
    %c0_i32_0 = arith.constant 0 : i32
    %c0_i32_1 = arith.constant 0 : i32
    return %c0_i32, %c0_i32_0 : i32, i32
  }
  func.func @transform_7(%arg0: i32) -> (i32, i32) {
    %c0_i32 = arith.constant 0 : i32
    %c0_i32_0 = arith.constant 0 : i32
    %c0_i32_1 = arith.constant 0 : i32
    return %c0_i32, %c0_i32_0 : i32, i32
  }
  func.func @transform_8(%arg0: i32) -> (i32, i32) {
    %c0_i32 = arith.constant 0 : i32
    %c0_i32_0 = arith.constant 0 : i32
    %c0_i32_1 = arith.constant 0 : i32
    return %c0_i32, %c0_i32_0 : i32, i32
  }
  func.func @transform_9(%arg0: i32) -> (i32, i32) {
    %c0_i32 = arith.constant 0 : i32
    %c0_i32_0 = arith.constant 0 : i32
    %c0_i32_1 = arith.constant 0 : i32
    return %c0_i32, %c0_i32_0 : i32, i32
  }
  func.func @transform_10(%arg0: i32) -> (i32, i32) {
    %c0_i32 = arith.constant 0 : i32
    %c0_i32_0 = arith.constant 0 : i32
    %c0_i32_1 = arith.constant 0 : i32
    return %c0_i32, %c0_i32_0 : i32, i32
  }
  func.func @transform_11(%arg0: i32) -> (i32, i32, i32) {
    %c0_i32 = arith.constant 0 : i32
    %c0_i32_0 = arith.constant 0 : i32
    %c0_i32_1 = arith.constant 0 : i32
    return %arg0, %c0_i32, %c0_i32_0 : i32, i32, i32
  }
}

</mosaic_0001>

<llo_original>
// kernel: tpu_custom_call.1
$region0: #{tpu_custom_call.1}
  #allocation0 [shape = 'u32[]', space=smem, size = 0x4, offset = 0x4, fixed_abs, tag = 'smem constant byte address 0x4 - core index']
  #allocation1 [shape = 'u32[72,128]{1,0:T(1,128)}', space=vmem, size = 0x9000, scoped, tag = 'internal scratch']
  %s0 = inlined_call_operand.hbm [shape: f32[2,8,32], index: 0, kind: input, shape index: {}]
  %s1 = inlined_call_operand.hbm [shape: f32[2,8,32], index: 1, kind: input, shape index: {}]
  %s2 = inlined_call_operand.hbm [shape: f32[2,8,32], index: 2, kind: input, shape index: {}]
  %s3 = inlined_call_operand.hbm [shape: f32[32,32], index: 3, kind: input, shape index: {}]
  %s4 = inlined_call_operand.vmem [shape: f32[1,32], index: 4, kind: input, shape index: {}]
  %s5 = inlined_call_operand.hbm [shape: f32[32,32], index: 5, kind: input, shape index: {}]
  %s6 = inlined_call_operand.vmem [shape: f32[1,32], index: 6, kind: input, shape index: {}]
  %s7 = inlined_call_operand.hbm [shape: f32[32,32], index: 7, kind: input, shape index: {}]
  %s8 = inlined_call_operand.vmem [shape: f32[1,32], index: 8, kind: input, shape index: {}]
  %s9 = inlined_call_operand.hbm [shape: f32[32,32], index: 9, kind: input, shape index: {}]
  %s10 = inlined_call_operand.vmem [shape: f32[1,32], index: 10, kind: input, shape index: {}]
  %s11 = inlined_call_operand.hbm [shape: f32[2,8,32], index: 11, kind: output, shape index: {}]
  %s12 = sld [smem:[#allocation0]]
  $region105: #{tpu_custom_call.1} parent=0
    _
  %s14 = ssub.s32 1, %s12
  %s15 = scalar_select 0, %s14, %s12
  $region1: #{tpu_custom_call.1} parent=0
    #allocation2 [shape = 'u8[8192]{0}', space=vmem, size = 0x2000, scoped, tag = 'input window, operand 0']
    #allocation3 [shape = 's32[2]{0}', space=sflag, size = 0x8, scoped, tag = 'scoped memory for tpu_custom_call.1']
    #allocation4 [shape = 's32[2]{0}', space=sflag, size = 0x8, scoped, tag = 'scoped memory for tpu_custom_call.1']
    #allocation5 [shape = 'u8[8192]{0}', space=vmem, size = 0x2000, scoped, tag = 'input window, operand 1']
    #allocation6 [shape = 's32[2]{0}', space=sflag, size = 0x8, scoped, tag = 'scoped memory for tpu_custom_call.1']
    #allocation7 [shape = 'u8[8192]{0}', space=vmem, size = 0x2000, scoped, tag = 'input window, operand 2']
    #allocation8 [shape = 'u8[16384]{0}', space=vmem, size = 0x4000, scoped, tag = 'input window, operand 3, single buffered']
    #allocation9 [shape = 's32[1]{0}', space=sflag, size = 0x4, scoped, tag = 'scoped memory for tpu_custom_call.1']
    #allocation10 [shape = 'u8[16384]{0}', space=vmem, size = 0x4000, scoped, tag = 'input window, operand 5, single buffered']
    #allocation11 [shape = 'u8[16384]{0}', space=vmem, size = 0x4000, scoped, tag = 'input window, operand 7, single buffered']
    #allocation12 [shape = 's32[1]{0}', space=sflag, size = 0x4, scoped, tag = 'scoped memory for tpu_custom_call.1']
    #allocation13 [shape = 'u8[16384]{0}', space=vmem, size = 0x4000, scoped, tag = 'input window, operand 9, single buffered']
    #allocation14 [shape = 'u8[8192]{0}', space=vmem, size = 0x2000, scoped, tag = 'output window, operand 0']
    %16 = vsyncpa [#allocation3], 0
    %s17 = scalar_lea.sflag [#allocation3], 1
    %18 = vsyncpa %s17, 0
    %19 = vsyncpa [#allocation6], 0
    %s20 = scalar_lea.sflag [#allocation6], 1
    %21 = vsyncpa %s20, 0
    %22 = vsyncpa [#allocation9], 0
    %23 = vsyncpa [#allocation12], 0
    %24 = vsyncpa [#allocation4], 0
    %s25 = scalar_lea.sflag [#allocation4], 1
    %26 = vsyncpa %s25, 0
    loop: start=0, step=1, limit=4
    $region2: #{tpu_custom_call.1} parent=1 // loop_pre_header
      _
    $region3: #{tpu_custom_call.1} parent=1 // loop_header
      %s28 = sphi 0, %s32
      %p29 = scmp.ge.s32.totalorder %s28, 4
      %s38 = sphi 0, %s40
      %s41 = sphi 0, %s38
      %s42 = sphi 0, %s41
      %s58 = sphi 0, %s42
      %s64 = sphi 0, %s66
      %s67 = sphi 0, %s64
      %s68 = sphi 0, %s67
      %s84 = sphi 0, %s68
      %s90 = sphi 0, %s92
      %s93 = sphi 0, %s90
      %s94 = sphi 0, %s93
      %s110 = sphi 0, %s94
      %s114 = sphi 0, %s114
      %s116 = sphi 0, %s114
      %s117 = sphi 0, %s116
      %s131 = sphi 0, %s117
      %s135 = sphi 0, %s135
      %s137 = sphi 0, %s135
      %s138 = sphi 0, %s137
      %s152 = sphi 0, %s138
      %s156 = sphi 0, %s156
      %s158 = sphi 0, %s156
      %s159 = sphi 0, %s158
      %s173 = sphi 0, %s159
      %s177 = sphi 0, %s177
      %s179 = sphi 0, %s177
      %s180 = sphi 0, %s179
      %s194 = sphi 0, %s180
      %s198 = sphi 0, %s198
      %s200 = sphi 0, %s198
      %s201 = sphi 0, %s200
      %s215 = sphi 0, %s201
      %s219 = sphi 0, %s219
      %s221 = sphi 0, %s219
      %s222 = sphi 0, %s221
      %s236 = sphi 0, %s222
      %s240 = sphi 0, %s240
      %s242 = sphi 0, %s240
      %s243 = sphi 0, %s242
      %s257 = sphi 0, %s243
      %s261 = sphi 0, %s261
      %s263 = sphi 0, %s261
      %s264 = sphi 0, %s263
      %s278 = sphi 0, %s264
      %s284 = sphi 0, %s286
      %s287 = sphi 0, %s284
      %s288 = sphi 0, %s287
      %s304 = sphi 0, %s288
    $region4: #{tpu_custom_call.1} parent=1 // loop_header_branch
      %31 = sbr.rel (%p29) target = $region8
    $region5: #{tpu_custom_call.1} parent=1 // loop_body
      %s33 = ssub.s32 %s28, 1
      %s34 = ssub.s32 %s28, 2
      %s35 = sadd.s32 %s28, 1
      %s36 = ssub.s32 %s28, %s35
      %p37 = scmp.eq.s32.totalorder %s36, 0
      %s39 = sadd.s32 %s38, 1
      %s40 = scalar_select %p37, %s38, %s39
      %p43 = pneg %p37
      %p44 = scmp.eq.s32.totalorder %s28, 1
      %p45 = por %p43, %p44
      %p46 = scmp.ne.s32.totalorder %s38, %s41
      %p47 = scmp.eq.s32.totalorder %s28, 0
      %p48 = por %p46, %p47
      %p49 = scmp.ne.s32.totalorder %s38, %s41
      %p50 = scmp.eq.s32.totalorder %s33, 1
      %p51 = por %p49, %p50
      %p52 = scmp.ne.s32.totalorder %s41, %s42
      %p53 = scmp.eq.s32.totalorder %s33, 0
      %p54 = por %p52, %p53
      %p55 = scmp.ne.s32.totalorder %s41, %s42
      %p56 = scmp.eq.s32.totalorder %s34, 1
      %p57 = por %p55, %p56
      %p59 = scmp.ne.s32.totalorder %s42, %s58
      %p60 = scmp.eq.s32.totalorder %s34, 0
      %p61 = por %p59, %p60
      %s62 = ssub.s32 %s28, %s35
      %p63 = scmp.eq.s32.totalorder %s62, 0
      %s65 = sadd.s32 %s64, 1
      %s66 = scalar_select %p63, %s64, %s65
      %p69 = pneg %p63
      %p70 = scmp.eq.s32.totalorder %s28, 1
      %p71 = por %p69, %p70
      %p72 = scmp.ne.s32.totalorder %s64, %s67
      %p73 = scmp.eq.s32.totalorder %s28, 0
      %p74 = por %p72, %p73
      %p75 = scmp.ne.s32.totalorder %s64, %s67
      %p76 = scmp.eq.s32.totalorder %s33, 1
      %p77 = por %p75, %p76
      %p78 = scmp.ne.s32.totalorder %s67, %s68
      %p79 = scmp.eq.s32.totalorder %s33, 0
      %p80 = por %p78, %p79
      %p81 = scmp.ne.s32.totalorder %s67, %s68
      %p82 = scmp.eq.s32.totalorder %s34, 1
      %p83 = por %p81, %p82
      %p85 = scmp.ne.s32.totalorder %s68, %s84
      %p86 = scmp.eq.s32.totalorder %s34, 0
      %p87 = por %p85, %p86
      %s88 = ssub.s32 %s28, %s35
      %p89 = scmp.eq.s32.totalorder %s88, 0
      %s91 = sadd.s32 %s90, 1
      %s92 = scalar_select %p89, %s90, %s91
      %p95 = pneg %p89
      %p96 = scmp.eq.s32.totalorder %s28, 1
      %p97 = por %p95, %p96
      %p98 = scmp.ne.s32.totalorder %s90, %s93
      %p99 = scmp.eq.s32.totalorder %s28, 0
      %p100 = por %p98, %p99
      %p101 = scmp.ne.s32.totalorder %s90, %s93
      %p102 = scmp.eq.s32.totalorder %s33, 1
      %p103 = por %p101, %p102
      %p104 = scmp.ne.s32.totalorder %s93, %s94
      %p105 = scmp.eq.s32.totalorder %s33, 0
      %p106 = por %p104, %p105
      %p107 = scmp.ne.s32.totalorder %s93, %s94
      %p108 = scmp.eq.s32.totalorder %s34, 1
      %p109 = por %p107, %p108
      %p111 = scmp.ne.s32.totalorder %s94, %s110
      %p112 = scmp.eq.s32.totalorder %s34, 0
      %p113 = por %p111, %p112
      %s115 = sadd.s32 %s114, 1
      %p118 = scmp.eq.s32.totalorder %s28, 1
      %p119 = scmp.ne.s32.totalorder %s114, %s116
      %p120 = scmp.eq.s32.totalorder %s28, 0
      %p121 = por %p119, %p120
      %p122 = scmp.ne.s32.totalorder %s114, %s116
      %p123 = scmp.eq.s32.totalorder %s33, 1
      %p124 = por %p122, %p123
      %p125 = scmp.ne.s32.totalorder %s116, %s117
      %p126 = scmp.eq.s32.totalorder %s33, 0
      %p127 = por %p125, %p126
      %p128 = scmp.ne.s32.totalorder %s116, %s117
      %p129 = scmp.eq.s32.totalorder %s34, 1
      %p130 = por %p128, %p129
      %p132 = scmp.ne.s32.totalorder %s117, %s131
      %p133 = scmp.eq.s32.totalorder %s34, 0
      %p134 = por %p132, %p133
      %s136 = sadd.s32 %s135, 1
      %p139 = scmp.eq.s32.totalorder %s28, 1
      %p140 = scmp.ne.s32.totalorder %s135, %s137
      %p141 = scmp.eq.s32.totalorder %s28, 0
      %p142 = por %p140, %p141
      %p143 = scmp.ne.s32.totalorder %s135, %s137
      %p144 = scmp.eq.s32.totalorder %s33, 1
      %p145 = por %p143, %p144
      %p146 = scmp.ne.s32.totalorder %s137, %s138
      %p147 = scmp.eq.s32.totalorder %s33, 0
      %p148 = por %p146, %p147
      %p149 = scmp.ne.s32.totalorder %s137, %s138
      %p150 = scmp.eq.s32.totalorder %s34, 1
      %p151 = por %p149, %p150
      %p153 = scmp.ne.s32.totalorder %s138, %s152
      %p154 = scmp.eq.s32.totalorder %s34, 0
      %p155 = por %p153, %p154
      %s157 = sadd.s32 %s156, 1
      %p160 = scmp.eq.s32.totalorder %s28, 1
      %p161 = scmp.ne.s32.totalorder %s156, %s158
      %p162 = scmp.eq.s32.totalorder %s28, 0
      %p163 = por %p161, %p162
      %p164 = scmp.ne.s32.totalorder %s156, %s158
      %p165 = scmp.eq.s32.totalorder %s33, 1
      %p166 = por %p164, %p165
      %p167 = scmp.ne.s32.totalorder %s158, %s159
      %p168 = scmp.eq.s32.totalorder %s33, 0
      %p169 = por %p167, %p168
      %p170 = scmp.ne.s32.totalorder %s158, %s159
      %p171 = scmp.eq.s32.totalorder %s34, 1
      %p172 = por %p170, %p171
      %p174 = scmp.ne.s32.totalorder %s159, %s173
      %p175 = scmp.eq.s32.totalorder %s34, 0
      %p176 = por %p174, %p175
      %s178 = sadd.s32 %s177, 1
      %p181 = scmp.eq.s32.totalorder %s28, 1
      %p182 = scmp.ne.s32.totalorder %s177, %s179
      %p183 = scmp.eq.s32.totalorder %s28, 0
      %p184 = por %p182, %p183
      %p185 = scmp.ne.s32.totalorder %s177, %s179
      %p186 = scmp.eq.s32.totalorder %s33, 1
      %p187 = por %p185, %p186
      %p188 = scmp.ne.s32.totalorder %s179, %s180
      %p189 = scmp.eq.s32.totalorder %s33, 0
      %p190 = por %p188, %p189
      %p191 = scmp.ne.s32.totalorder %s179, %s180
      %p192 = scmp.eq.s32.totalorder %s34, 1
      %p193 = por %p191, %p192
      %p195 = scmp.ne.s32.totalorder %s180, %s194
      %p196 = scmp.eq.s32.totalorder %s34, 0
      %p197 = por %p195, %p196
      %s199 = sadd.s32 %s198, 1
      %p202 = scmp.eq.s32.totalorder %s28, 1
      %p203 = scmp.ne.s32.totalorder %s198, %s200
      %p204 = scmp.eq.s32.totalorder %s28, 0
      %p205 = por %p203, %p204
      %p206 = scmp.ne.s32.totalorder %s198, %s200
      %p207 = scmp.eq.s32.totalorder %s33, 1
      %p208 = por %p206, %p207
      %p209 = scmp.ne.s32.totalorder %s200, %s201
      %p210 = scmp.eq.s32.totalorder %s33, 0
      %p211 = por %p209, %p210
      %p212 = scmp.ne.s32.totalorder %s200, %s201
      %p213 = scmp.eq.s32.totalorder %s34, 1
      %p214 = por %p212, %p213
      %p216 = scmp.ne.s32.totalorder %s201, %s215
      %p217 = scmp.eq.s32.totalorder %s34, 0
      %p218 = por %p216, %p217
      %s220 = sadd.s32 %s219, 1
      %p223 = scmp.eq.s32.totalorder %s28, 1
      %p224 = scmp.ne.s32.totalorder %s219, %s221
      %p225 = scmp.eq.s32.totalorder %s28, 0
      %p226 = por %p224, %p225
      %p227 = scmp.ne.s32.totalorder %s219, %s221
      %p228 = scmp.eq.s32.totalorder %s33, 1
      %p229 = por %p227, %p228
      %p230 = scmp.ne.s32.totalorder %s221, %s222
      %p231 = scmp.eq.s32.totalorder %s33, 0
      %p232 = por %p230, %p231
      %p233 = scmp.ne.s32.totalorder %s221, %s222
      %p234 = scmp.eq.s32.totalorder %s34, 1
      %p235 = por %p233, %p234
      %p237 = scmp.ne.s32.totalorder %s222, %s236
      %p238 = scmp.eq.s32.totalorder %s34, 0
      %p239 = por %p237, %p238
      %s241 = sadd.s32 %s240, 1
      %p244 = scmp.eq.s32.totalorder %s28, 1
      %p245 = scmp.ne.s32.totalorder %s240, %s242
      %p246 = scmp.eq.s32.totalorder %s28, 0
      %p247 = por %p245, %p246
      %p248 = scmp.ne.s32.totalorder %s240, %s242
      %p249 = scmp.eq.s32.totalorder %s33, 1
      %p250 = por %p248, %p249
      %p251 = scmp.ne.s32.totalorder %s242, %s243
      %p252 = scmp.eq.s32.totalorder %s33, 0
      %p253 = por %p251, %p252
      %p254 = scmp.ne.s32.totalorder %s242, %s243
      %p255 = scmp.eq.s32.totalorder %s34, 1
      %p256 = por %p254, %p255
      %p258 = scmp.ne.s32.totalorder %s243, %s257
      %p259 = scmp.eq.s32.totalorder %s34, 0
      %p260 = por %p258, %p259
      %s262 = sadd.s32 %s261, 1
      %p265 = scmp.eq.s32.totalorder %s28, 1
      %p266 = scmp.ne.s32.totalorder %s261, %s263
      %p267 = scmp.eq.s32.totalorder %s28, 0
      %p268 = por %p266, %p267
      %p269 = scmp.ne.s32.totalorder %s261, %s263
      %p270 = scmp.eq.s32.totalorder %s33, 1
      %p271 = por %p269, %p270
      %p272 = scmp.ne.s32.totalorder %s263, %s264
      %p273 = scmp.eq.s32.totalorder %s33, 0
      %p274 = por %p272, %p273
      %p275 = scmp.ne.s32.totalorder %s263, %s264
      %p276 = scmp.eq.s32.totalorder %s34, 1
      %p277 = por %p275, %p276
      %p279 = scmp.ne.s32.totalorder %s264, %s278
      %p280 = scmp.eq.s32.totalorder %s34, 0
      %p281 = por %p279, %p280
      %s282 = ssub.s32 %s28, %s35
      %p283 = scmp.eq.s32.totalorder %s282, 0
      %s285 = sadd.s32 %s284, 1
      %s286 = scalar_select %p283, %s284, %s285
      %p289 = pneg %p283
      %p290 = scmp.eq.s32.totalorder %s28, 1
      %p291 = por %p289, %p290
      %p292 = scmp.ne.s32.totalorder %s284, %s287
      %p293 = scmp.eq.s32.totalorder %s28, 0
      %p294 = por %p292, %p293
      %p295 = scmp.ne.s32.totalorder %s284, %s287
      %p296 = scmp.eq.s32.totalorder %s33, 1
      %p297 = por %p295, %p296
      %p298 = scmp.ne.s32.totalorder %s287, %s288
      %p299 = scmp.eq.s32.totalorder %s33, 0
      %p300 = por %p298, %p299
      %p301 = scmp.ne.s32.totalorder %s287, %s288
      %p302 = scmp.eq.s32.totalorder %s34, 1
      %p303 = por %p301, %p302
      %p305 = scmp.ne.s32.totalorder %s288, %s304
      %p306 = scmp.eq.s32.totalorder %s34, 0
      %p307 = por %p305, %p306
      %p308 = scmp.le.s32.totalorder 1, %s28
      %p309 = scmp.lt.s32.totalorder %s28, 3
      %p310 = pnand %p308, %p309
      %p311 = pneg %p310
      // Predicated region
      $region9: #{tpu_custom_call.1} parent=5 // pred_check
        _
      $region10: #{tpu_custom_call.1} parent=5 // pred_check_branch
        %313 = sbr.rel (%p310) target = $region12
      $region11: #{tpu_custom_call.1} parent=5 // pred_region
        %s314 = ssub.s32 %s28, 1
        // Predicated region
        $region13: #{tpu_custom_call.1} parent=11 // pred_check
          %p315 = pneg %p127
        $region14: #{tpu_custom_call.1} parent=11 // pred_check_branch
          %317 = sbr.rel (%p315) target = $region16
        $region15: #{tpu_custom_call.1} parent=11 // pred_region
          %319 = vsyncadd [#allocation9], 0
          %s320 = sshll.u32 %s3, 4
          %s321 = int_to_ptr.hbm [resolvable:$true] %s320
          %s322 = sshll.u32 [#allocation8], 4
          %s323 = int_to_ptr.vmem [resolvable:$true] %s322
          %328 = dma.hbm_to_vmem [thread:$0]  %s321, 512, %s323, [#allocation9], 128, 128, 8
        $region16: #{tpu_custom_call.1} parent=11 // pred_fallthru
          _
        // Predicated region
        $region17: #{tpu_custom_call.1} parent=11 // pred_check
          %p329 = pneg %p148
        $region18: #{tpu_custom_call.1} parent=11 // pred_check_branch
          %331 = sbr.rel (%p329) target = $region20
        $region19: #{tpu_custom_call.1} parent=11 // pred_region
          _
        $region20: #{tpu_custom_call.1} parent=11 // pred_fallthru
          _
        // Predicated region
        $region21: #{tpu_custom_call.1} parent=11 // pred_check
          %p332 = pneg %p169
        $region22: #{tpu_custom_call.1} parent=11 // pred_check_branch
          %334 = sbr.rel (%p332) target = $region24
        $region23: #{tpu_custom_call.1} parent=11 // pred_region
          %336 = vsyncadd [#allocation9], 0
          %s337 = sshll.u32 %s5, 4
          %s338 = int_to_ptr.hbm [resolvable:$true] %s337
          %s339 = sshll.u32 [#allocation10], 4
          %s340 = int_to_ptr.vmem [resolvable:$true] %s339
          %345 = dma.hbm_to_vmem [thread:$0]  %s338, 512, %s340, [#allocation9], 128, 128, 8
        $region24: #{tpu_custom_call.1} parent=11 // pred_fallthru
          _
        // Predicated region
        $region25: #{tpu_custom_call.1} parent=11 // pred_check
          %p346 = pneg %p190
        $region26: #{tpu_custom_call.1} parent=11 // pred_check_branch
          %348 = sbr.rel (%p346) target = $region28
        $region27: #{tpu_custom_call.1} parent=11 // pred_region
          _
        $region28: #{tpu_custom_call.1} parent=11 // pred_fallthru
          _
        // Predicated region
        $region29: #{tpu_custom_call.1} parent=11 // pred_check
          %p349 = pneg %p211
        $region30: #{tpu_custom_call.1} parent=11 // pred_check_branch
          %351 = sbr.rel (%p349) target = $region32
        $region31: #{tpu_custom_call.1} parent=11 // pred_region
          %353 = vsyncadd [#allocation12], 0
          %s354 = sshll.u32 %s7, 4
          %s355 = int_to_ptr.hbm [resolvable:$true] %s354
          %s356 = sshll.u32 [#allocation11], 4
          %s357 = int_to_ptr.vmem [resolvable:$true] %s356
          %362 = dma.hbm_to_vmem [thread:$0]  %s355, 512, %s357, [#allocation12], 128, 128, 8
        $region32: #{tpu_custom_call.1} parent=11 // pred_fallthru
          _
        // Predicated region
        $region33: #{tpu_custom_call.1} parent=11 // pred_check
          %p363 = pneg %p232
        $region34: #{tpu_custom_call.1} parent=11 // pred_check_branch
          %365 = sbr.rel (%p363) target = $region36
        $region35: #{tpu_custom_call.1} parent=11 // pred_region
          _
        $region36: #{tpu_custom_call.1} parent=11 // pred_fallthru
          _
        // Predicated region
        $region37: #{tpu_custom_call.1} parent=11 // pred_check
          %p366 = pneg %p253
        $region38: #{tpu_custom_call.1} parent=11 // pred_check_branch
          %368 = sbr.rel (%p366) target = $region40
        $region39: #{tpu_custom_call.1} parent=11 // pred_region
          %370 = vsyncadd [#allocation12], 0
          %s371 = sshll.u32 %s9, 4
          %s372 = int_to_ptr.hbm [resolvable:$true] %s371
          %s373 = sshll.u32 [#allocation13], 4
          %s374 = int_to_ptr.vmem [resolvable:$true] %s373
          %379 = dma.hbm_to_vmem [thread:$0]  %s372, 512, %s374, [#allocation12], 128, 128, 8
        $region40: #{tpu_custom_call.1} parent=11 // pred_fallthru
          _
        // Predicated region
        $region41: #{tpu_custom_call.1} parent=11 // pred_check
          %p380 = pneg %p274
        $region42: #{tpu_custom_call.1} parent=11 // pred_check_branch
          %382 = sbr.rel (%p380) target = $region44
        $region43: #{tpu_custom_call.1} parent=11 // pred_region
          _
        $region44: #{tpu_custom_call.1} parent=11 // pred_fallthru
          _
      $region12: #{tpu_custom_call.1} parent=5 // pred_fallthru
        _
      %p383 = scmp.lt.s32.totalorder %s28, 2
      // Predicated region
      $region45: #{tpu_custom_call.1} parent=5 // pred_check
        %p384 = pneg %p383
      $region46: #{tpu_custom_call.1} parent=5 // pred_check_branch
        %386 = sbr.rel (%p384) target = $region48
      $region47: #{tpu_custom_call.1} parent=5 // pred_region
        // Predicated region
        $region49: #{tpu_custom_call.1} parent=47 // pred_check
          %p387 = pneg %p48
        $region50: #{tpu_custom_call.1} parent=47 // pred_check_branch
          %389 = sbr.rel (%p387) target = $region52
        $region51: #{tpu_custom_call.1} parent=47 // pred_region
          %s390 = sand.u32 %s38, 1
          %s391 = scalar_lea.sflag [#allocation3], %s390
          %s392 = sand.u32 %s38, 1
          %s393 = smul.addr %s392, 8
          %s394 = scalar_lea.vmem [#allocation2], %s393
          %396 = vsyncadd %s391, 0
          %s397 = smul.addr %s28, 8
          %s398 = scalar_lea.hbm %s0, %s397
          %s400 = sshll.u32 %s398, 4
          %s401 = int_to_ptr.hbm [resolvable:$true] %s400
          %s402 = sshll.u32 %s394, 4
          %s403 = int_to_ptr.vmem [resolvable:$true] %s402
          %405 = dma.hbm_to_vmem [thread:$0]  %s401, 128, %s403, %s391
        $region52: #{tpu_custom_call.1} parent=47 // pred_fallthru
          _
        // Predicated region
        $region53: #{tpu_custom_call.1} parent=47 // pred_check
          %p406 = pneg %p74
        $region54: #{tpu_custom_call.1} parent=47 // pred_check_branch
          %408 = sbr.rel (%p406) target = $region56
        $region55: #{tpu_custom_call.1} parent=47 // pred_region
          %s409 = sand.u32 %s28, 1
          %s410 = scalar_lea.sflag [#allocation6], %s409
          %s411 = sand.u32 %s64, 1
          %s412 = smul.addr %s411, 8
          %s413 = scalar_lea.vmem [#allocation5], %s412
          %415 = vsyncadd %s410, 0
          %s416 = smul.addr %s28, 8
          %s417 = scalar_lea.hbm %s1, %s416
          %s419 = sshll.u32 %s417, 4
          %s420 = int_to_ptr.hbm [resolvable:$true] %s419
          %s421 = sshll.u32 %s413, 4
          %s422 = int_to_ptr.vmem [resolvable:$true] %s421
          %424 = dma.hbm_to_vmem [thread:$0]  %s420, 128, %s422, %s410
        $region56: #{tpu_custom_call.1} parent=47 // pred_fallthru
          _
        // Predicated region
        $region57: #{tpu_custom_call.1} parent=47 // pred_check
          %p425 = pneg %p100
        $region58: #{tpu_custom_call.1} parent=47 // pred_check_branch
          %427 = sbr.rel (%p425) target = $region60
        $region59: #{tpu_custom_call.1} parent=47 // pred_region
          %s428 = sand.u32 %s28, 1
          %s429 = scalar_lea.sflag [#allocation6], %s428
          %s430 = sand.u32 %s90, 1
          %s431 = smul.addr %s430, 8
          %s432 = scalar_lea.vmem [#allocation7], %s431
          %434 = vsyncadd %s429, 0
          %s435 = smul.addr %s28, 8
          %s436 = scalar_lea.hbm %s2, %s435
          %s438 = sshll.u32 %s436, 4
          %s439 = int_to_ptr.hbm [resolvable:$true] %s438
          %s440 = sshll.u32 %s432, 4
          %s441 = int_to_ptr.vmem [resolvable:$true] %s440
          %443 = dma.hbm_to_vmem [thread:$0]  %s439, 128, %s441, %s429
        $region60: #{tpu_custom_call.1} parent=47 // pred_fallthru
          _
      $region48: #{tpu_custom_call.1} parent=5 // pred_fallthru
        _
      %p444 = scmp.le.s32.totalorder 1, %s28
      %p445 = scmp.lt.s32.totalorder %s28, 3
      %p446 = pnand %p444, %p445
      %p447 = pneg %p446
      // Predicated region
      $region61: #{tpu_custom_call.1} parent=5 // pred_check
        _
      $region62: #{tpu_custom_call.1} parent=5 // pred_check_branch
        %449 = sbr.rel (%p446) target = $region64
      $region63: #{tpu_custom_call.1} parent=5 // pred_region
        %s450 = ssub.s32 %s28, 1
        %s451 = sand.u32 %s41, 1
        %s452 = scalar_lea.sflag [#allocation3], %s451
        %s453 = sand.u32 %s41, 1
        %s454 = smul.addr %s453, 8
        %s455 = scalar_lea.vmem [#allocation2], %s454
        // Predicated region
        $region65: #{tpu_custom_call.1} parent=63 // pred_check
          %p456 = pneg %p54
        $region66: #{tpu_custom_call.1} parent=63 // pred_check_branch
          %458 = sbr.rel (%p456) target = $region68
        $region67: #{tpu_custom_call.1} parent=63 // pred_region
          %460 = dma.done %s452, 128
        $region68: #{tpu_custom_call.1} parent=63 // pred_fallthru
          _
        %s461 = sand.u32 %s33, 1
        %s462 = scalar_lea.sflag [#allocation6], %s461
        %s463 = sand.u32 %s67, 1
        %s464 = smul.addr %s463, 8
        %s465 = scalar_lea.vmem [#allocation5], %s464
        // Predicated region
        $region69: #{tpu_custom_call.1} parent=63 // pred_check
          %p466 = pneg %p80
        $region70: #{tpu_custom_call.1} parent=63 // pred_check_branch
          %468 = sbr.rel (%p466) target = $region72
        $region71: #{tpu_custom_call.1} parent=63 // pred_region
          %470 = dma.done %s462, 128
        $region72: #{tpu_custom_call.1} parent=63 // pred_fallthru
          _
        %s471 = sand.u32 %s33, 1
        %s472 = scalar_lea.sflag [#allocation6], %s471
        %s473 = sand.u32 %s93, 1
        %s474 = smul.addr %s473, 8
        %s475 = scalar_lea.vmem [#allocation7], %s474
        // Predicated region
        $region73: #{tpu_custom_call.1} parent=63 // pred_check
          %p476 = pneg %p106
        $region74: #{tpu_custom_call.1} parent=63 // pred_check_branch
          %478 = sbr.rel (%p476) target = $region76
        $region75: #{tpu_custom_call.1} parent=63 // pred_region
          %480 = dma.done %s472, 128
        $region76: #{tpu_custom_call.1} parent=63 // pred_fallthru
          _
        // Predicated region
        $region77: #{tpu_custom_call.1} parent=63 // pred_check
          %p481 = pneg %p127
        $region78: #{tpu_custom_call.1} parent=63 // pred_check_branch
          %483 = sbr.rel (%p481) target = $region80
        $region79: #{tpu_custom_call.1} parent=63 // pred_region
          %485 = dma.done [#allocation9], 512
        $region80: #{tpu_custom_call.1} parent=63 // pred_fallthru
          _
        // Predicated region
        $region81: #{tpu_custom_call.1} parent=63 // pred_check
          %p486 = pneg %p169
        $region82: #{tpu_custom_call.1} parent=63 // pred_check_branch
          %488 = sbr.rel (%p486) target = $region84
        $region83: #{tpu_custom_call.1} parent=63 // pred_region
          %490 = dma.done [#allocation9], 512
        $region84: #{tpu_custom_call.1} parent=63 // pred_fallthru
          _
        // Predicated region
        $region85: #{tpu_custom_call.1} parent=63 // pred_check
          %p491 = pneg %p211
        $region86: #{tpu_custom_call.1} parent=63 // pred_check_branch
          %493 = sbr.rel (%p491) target = $region88
        $region87: #{tpu_custom_call.1} parent=63 // pred_region
          %495 = dma.done [#allocation12], 512
        $region88: #{tpu_custom_call.1} parent=63 // pred_fallthru
          _
        // Predicated region
        $region89: #{tpu_custom_call.1} parent=63 // pred_check
          %p496 = pneg %p253
        $region90: #{tpu_custom_call.1} parent=63 // pred_check_branch
          %498 = sbr.rel (%p496) target = $region92
        $region91: #{tpu_custom_call.1} parent=63 // pred_region
          %500 = dma.done [#allocation12], 512
        $region92: #{tpu_custom_call.1} parent=63 // pred_fallthru
          _
        %s501 = sand.u32 %s41, 1
        %s502 = scalar_lea.sflag [#allocation3], %s501
        %s503 = sand.u32 %s41, 1
        %s504 = smul.addr %s503, 8
        %s505 = scalar_lea.vmem [#allocation2], %s504
        %p506 = pneg %p54
        %p507 = pneg %p51
        %s508 = sand.u32 %s33, 1
        %s509 = scalar_lea.sflag [#allocation6], %s508
        %s510 = sand.u32 %s67, 1
        %s511 = smul.addr %s510, 8
        %s512 = scalar_lea.vmem [#allocation5], %s511
        %p513 = pneg %p80
        %p514 = pneg %p77
        %s515 = sand.u32 %s33, 1
        %s516 = scalar_lea.sflag [#allocation6], %s515
        %s517 = sand.u32 %s93, 1
        %s518 = smul.addr %s517, 8
        %s519 = scalar_lea.vmem [#allocation7], %s518
        %p520 = pneg %p106
        %p521 = pneg %p103
        %p522 = pneg %p127
        %p523 = pneg %p124
        %p524 = pneg %p148
        %p525 = pneg %p145
        %p526 = pneg %p169
        %p527 = pneg %p166
        %p528 = pneg %p190
        %p529 = pneg %p187
        %p530 = pneg %p211
        %p531 = pneg %p208
        %p532 = pneg %p232
        %p533 = pneg %p229
        %p534 = pneg %p253
        %p535 = pneg %p250
        %p536 = pneg %p274
        %p537 = pneg %p271
        %p538 = pneg %p300
        %p539 = pneg %p297
        %s540 = sand.u32 %s287, 1
        %s541 = scalar_lea.sflag [#allocation4], %s540
        %s542 = sand.u32 %s287, 1
        %s543 = smul.addr %s542, 8
        %s544 = scalar_lea.vmem [#allocation14], %s543
        %v545 = vld [vmem:[%s455] sm:$0xff]
        %v546 = vld [vmem:[#allocation8] sm:$0xff]
        %v547 = vld [vmem:[#allocation8 + $0x8] sm:$0xff]
        %v548 = vld [vmem:[#allocation8 + $0x10] sm:$0xff]
        %v549 = vld [vmem:[#allocation8 + $0x18] sm:$0xff]
        %v550 = vld [vmem:[%s4] sm:$0x1]
        %v552 = vperm.slane %v550, 0
        %vm554 = vcmask 261120
        %v556 = vsel %vm554, %v545, 0
        %558 = vmatpush.msra.mxu0 0.0
        %559 = vmatpush.msra.mxu0 0.0
        %560 = vmatpush.msra.mxu0 0.0
        %561 = vmatpush.msra.mxu0 0.0
        %562 = vmatpush.msra.mxu0 0.0
        %563 = vmatpush.msra.mxu0 0.0
        %564 = vmatpush.msra.mxu0 0.0
        %565 = vmatpush.msra.mxu0 0.0
        %566 = vmatpush.msra.mxu0 0.0
        %567 = vmatpush.msra.mxu0 0.0
        %568 = vmatpush.msra.mxu0 0.0
        %569 = vmatpush.msra.mxu0 0.0
        %570 = vmatpush.msra.mxu0 %v549
        %571 = vmatpush.msra.mxu0 %v548
        %572 = vmatpush.msra.mxu0 %v547
        %573 = vmatpush.msra.mxu0 %v546
        %574 = vmatmul.f32.gmra.mxu0 %v556
        %v575 = vpop.f32.mrf.mxu0
        %v576 = vadd.f32 %v552, %v575
        %577 = vdwg.mxu0
        %v578 = vld [vmem:[%s465] sm:$0xff]
        %v579 = vld [vmem:[#allocation10] sm:$0xff]
        %v580 = vld [vmem:[#allocation10 + $0x8] sm:$0xff]
        %v581 = vld [vmem:[#allocation10 + $0x10] sm:$0xff]
        %v582 = vld [vmem:[#allocation10 + $0x18] sm:$0xff]
        %v583 = vld [vmem:[%s6] sm:$0x1]
        %v585 = vperm.slane %v583, 0
        %v588 = vsel %vm554, %v578, 0
        %590 = vmatpush.msra.mxu0 0.0
        %591 = vmatpush.msra.mxu0 0.0
        %592 = vmatpush.msra.mxu0 0.0
        %593 = vmatpush.msra.mxu0 0.0
        %594 = vmatpush.msra.mxu0 0.0
        %595 = vmatpush.msra.mxu0 0.0
        %596 = vmatpush.msra.mxu0 0.0
        %597 = vmatpush.msra.mxu0 0.0
        %598 = vmatpush.msra.mxu0 0.0
        %599 = vmatpush.msra.mxu0 0.0
        %600 = vmatpush.msra.mxu0 0.0
        %601 = vmatpush.msra.mxu0 0.0
        %602 = vmatpush.msra.mxu0 %v582
        %603 = vmatpush.msra.mxu0 %v581
        %604 = vmatpush.msra.mxu0 %v580
        %605 = vmatpush.msra.mxu0 %v579
        %606 = vmatmul.f32.gmra.mxu0 %v588
        %v607 = vpop.f32.mrf.mxu0
        %v608 = vadd.f32 %v585, %v607
        %609 = vdwg.mxu0
        %v610 = vld [vmem:[%s475] sm:$0xff]
        %v611 = vld [vmem:[#allocation11] sm:$0xff]
        %v612 = vld [vmem:[#allocation11 + $0x8] sm:$0xff]
        %v613 = vld [vmem:[#allocation11 + $0x10] sm:$0xff]
        %v614 = vld [vmem:[#allocation11 + $0x18] sm:$0xff]
        %v615 = vld [vmem:[%s8] sm:$0x1]
        %v617 = vperm.slane %v615, 0
        %v620 = vsel %vm554, %v610, 0
        %622 = vmatpush.msra.mxu0 0.0
        %623 = vmatpush.msra.mxu0 0.0
        %624 = vmatpush.msra.mxu0 0.0
        %625 = vmatpush.msra.mxu0 0.0
        %626 = vmatpush.msra.mxu0 0.0
        %627 = vmatpush.msra.mxu0 0.0
        %628 = vmatpush.msra.mxu0 0.0
        %629 = vmatpush.msra.mxu0 0.0
        %630 = vmatpush.msra.mxu0 0.0
        %631 = vmatpush.msra.mxu0 0.0
        %632 = vmatpush.msra.mxu0 0.0
        %633 = vmatpush.msra.mxu0 0.0
        %634 = vmatpush.msra.mxu0 %v614
        %635 = vmatpush.msra.mxu0 %v613
        %636 = vmatpush.msra.mxu0 %v612
        %637 = vmatpush.msra.mxu0 %v611
        %638 = vmatmul.f32.gmra.mxu0 %v620
        %v639 = vpop.f32.mrf.mxu0
        %v640 = vadd.f32 %v617, %v639
        %641 = vdwg.mxu0
        %v642 = vmul.f32 %v576, 0.35355338
        %vm643 = vcmask 64512
        %v645 = vsel %vm643, %v642, 0
        %v648 = vsel %vm643, %v608, 0
        %650 = vmatpush.xpose.msra.mxu0 0.0
        %651 = vmatpush.xpose.msra.mxu0 0.0
        %652 = vmatpush.xpose.msra.mxu0 0.0
        %653 = vmatpush.xpose.msra.mxu0 0.0
        %654 = vmatpush.xpose.msra.mxu0 0.0
        %655 = vmatpush.xpose.msra.mxu0 0.0
        %656 = vmatpush.xpose.msra.mxu0 0.0
        %657 = vmatpush.xpose.msra.mxu0 0.0
        %658 = vmatpush.xpose.msra.mxu0 0.0
        %659 = vmatpush.xpose.msra.mxu0 0.0
        %660 = vmatpush.xpose.msra.mxu0 0.0
        %661 = vmatpush.xpose.msra.mxu0 0.0
        %662 = vmatpush.xpose.msra.mxu0 0.0
        %663 = vmatpush.xpose.msra.mxu0 0.0
        %664 = vmatpush.xpose.msra.mxu0 0.0
        %665 = vmatpush.xpose.msra.mxu0 %v648
        %666 = vmatmul.f32.gmra.mxu0 %v645
        %v667 = vpop.f32.mrf.mxu0
        %v668 = vadd.f32 0.0, %v667
        %669 = vdwg.mxu0
        %v670 = vsel %vm643, %v668, -inf
        %671 = vmax.xlane.f32.xlu0 %v670
        %v672 = vpop.xlane.xlu0 %671
        %v673 = vsub.f32 %v668, %v672
        %v674 = vmul.f32 %v673, 1.442695
        %v675 = vpow.pop %v674
        %v676 = vsel %vm643, %v675, 0.0
        %677 = vadd.xlane.f32.xlu0 %v676
        %v678 = vpop.xlane.xlu0 %677
        %v679 = vrcp.pop %v678
        %v680 = vmul.f32 %v678, %v679
        %v681 = vsub.f32 2.0, %v680
        %v682 = vmul.f32 %v679, %v681
        %v683 = vmul.f32 %v675, %v682
        %v685 = vsel %vm643, %v683, 0
        %687 = vmatpush.msra.mxu0 0.0
        %688 = vmatpush.msra.mxu0 0.0
        %689 = vmatpush.msra.mxu0 0.0
        %690 = vmatpush.msra.mxu0 0.0
        %691 = vmatpush.msra.mxu0 0.0
        %692 = vmatpush.msra.mxu0 0.0
        %693 = vmatpush.msra.mxu0 0.0
        %694 = vmatpush.msra.mxu0 0.0
        %695 = vmatpush.msra.mxu0 0.0
        %696 = vmatpush.msra.mxu0 0.0
        %697 = vmatpush.msra.mxu0 0.0
        %698 = vmatpush.msra.mxu0 0.0
        %699 = vmatpush.msra.mxu0 0.0
        %700 = vmatpush.msra.mxu0 0.0
        %701 = vmatpush.msra.mxu0 0.0
        %702 = vmatpush.msra.mxu0 %v640
        %703 = vmatmul.f32.gmra.mxu0 %v685
        %v704 = vpop.f32.mrf.mxu0
        %v705 = vadd.f32 0.0, %v704
        %706 = vdwg.mxu0
        %v707 = vld [vmem:[#allocation13] sm:$0xff]
        %708 = vrot.lane.b32.xlu0 %v642, 120
        %v709 = vpop.permute.xlu0 %708
        %710 = vrot.lane.b32.xlu0 %v608, 120
        %v711 = vpop.permute.xlu0 %710
        %v712 = vsel %vm643, %v709, 0
        %v714 = vsel %vm643, %v711, 0
        %716 = vmatpush.xpose.msra.mxu0 0.0
        %717 = vmatpush.xpose.msra.mxu0 0.0
        %718 = vmatpush.xpose.msra.mxu0 0.0
        %719 = vmatpush.xpose.msra.mxu0 0.0
        %720 = vmatpush.xpose.msra.mxu0 0.0
        %721 = vmatpush.xpose.msra.mxu0 0.0
        %722 = vmatpush.xpose.msra.mxu0 0.0
        %723 = vmatpush.xpose.msra.mxu0 0.0
        %724 = vmatpush.xpose.msra.mxu0 0.0
        %725 = vmatpush.xpose.msra.mxu0 0.0
        %726 = vmatpush.xpose.msra.mxu0 0.0
        %727 = vmatpush.xpose.msra.mxu0 0.0
        %728 = vmatpush.xpose.msra.mxu0 0.0
        %729 = vmatpush.xpose.msra.mxu0 0.0
        %730 = vmatpush.xpose.msra.mxu0 0.0
        %731 = vmatpush.xpose.msra.mxu0 %v714
        %732 = vmatmul.f32.gmra.mxu0 %v712
        %v733 = vpop.f32.mrf.mxu0
        %v734 = vadd.f32 0.0, %v733
        %735 = vdwg.mxu0
        %v736 = vsel %vm643, %v734, -inf
        %737 = vmax.xlane.f32.xlu0 %v736
        %v738 = vpop.xlane.xlu0 %737
        %v739 = vsub.f32 %v734, %v738
        %v740 = vmul.f32 %v739, 1.442695
        %v741 = vpow.pop %v740
        %v742 = vsel %vm643, %v741, 0.0
        %743 = vadd.xlane.f32.xlu0 %v742
        %v744 = vpop.xlane.xlu0 %743
        %v745 = vrcp.pop %v744
        %v746 = vmul.f32 %v744, %v745
        %v747 = vsub.f32 2.0, %v746
        %v748 = vmul.f32 %v745, %v747
        %v749 = vmul.f32 %v741, %v748
        %751 = vrot.lane.b32.xlu0 %v640, 120
        %v752 = vpop.permute.xlu0 %751
        %v755 = vsel %vm643, %v749, 0
        %757 = vmatpush.msra.mxu0 0.0
        %758 = vmatpush.msra.mxu0 0.0
        %759 = vmatpush.msra.mxu0 0.0
        %760 = vmatpush.msra.mxu0 0.0
        %761 = vmatpush.msra.mxu0 0.0
        %762 = vmatpush.msra.mxu0 0.0
        %763 = vmatpush.msra.mxu0 0.0
        %764 = vmatpush.msra.mxu0 0.0
        %765 = vmatpush.msra.mxu0 0.0
        %766 = vmatpush.msra.mxu0 0.0
        %767 = vmatpush.msra.mxu0 0.0
        %768 = vmatpush.msra.mxu0 0.0
        %769 = vmatpush.msra.mxu0 0.0
        %770 = vmatpush.msra.mxu0 0.0
        %771 = vmatpush.msra.mxu0 0.0
        %772 = vmatpush.msra.mxu0 %v752
        %773 = vmatmul.f32.gmra.mxu0 %v755
        %v774 = vpop.f32.mrf.mxu0
        %v775 = vadd.f32 0.0, %v774
        %776 = vdwg.mxu0
        %v777 = vld [vmem:[#allocation13 + $0x8] sm:$0xff]
        %v779 = vsel %vm643, %v775, 0
        %781 = vmatpush.msra.mxu0 0.0
        %782 = vmatpush.msra.mxu0 0.0
        %783 = vmatpush.msra.mxu0 0.0
        %784 = vmatpush.msra.mxu0 0.0
        %785 = vmatpush.msra.mxu0 0.0
        %786 = vmatpush.msra.mxu0 0.0
        %787 = vmatpush.msra.mxu0 0.0
        %788 = vmatpush.msra.mxu0 0.0
        %789 = vmatpush.msra.mxu0 0.0
        %790 = vmatpush.msra.mxu0 0.0
        %791 = vmatpush.msra.mxu0 0.0
        %792 = vmatpush.msra.mxu0 0.0
        %793 = vmatpush.msra.mxu0 0.0
        %794 = vmatpush.msra.mxu0 0.0
        %795 = vmatpush.msra.mxu0 0.0
        %796 = vmatpush.msra.mxu0 %v777
        %797 = vmatmul.f32.gmra.mxu0 %v779
        %v798 = vpop.f32.mrf.mxu0
        %v799 = vadd.f32 0.0, %v798
        %800 = vdwg.mxu0
        %v802 = vsel %vm643, %v705, 0
        %804 = vmatpush.msra.mxu0 0.0
        %805 = vmatpush.msra.mxu0 0.0
        %806 = vmatpush.msra.mxu0 0.0
        %807 = vmatpush.msra.mxu0 0.0
        %808 = vmatpush.msra.mxu0 0.0
        %809 = vmatpush.msra.mxu0 0.0
        %810 = vmatpush.msra.mxu0 0.0
        %811 = vmatpush.msra.mxu0 0.0
        %812 = vmatpush.msra.mxu0 0.0
        %813 = vmatpush.msra.mxu0 0.0
        %814 = vmatpush.msra.mxu0 0.0
        %815 = vmatpush.msra.mxu0 0.0
        %816 = vmatpush.msra.mxu0 0.0
        %817 = vmatpush.msra.mxu0 0.0
        %818 = vmatpush.msra.mxu0 0.0
        %819 = vmatpush.msra.mxu0 %v707
        %820 = vmatmul.f32.gmra.mxu0 %v802
        %v821 = vpop.f32.mrf.mxu0
        %v822 = vadd.f32 %v799, %v821
        %823 = vdwg.mxu0
        %824 = vrot.lane.b32.xlu0 %v642, 112
        %v825 = vpop.permute.xlu0 %824
        %826 = vrot.lane.b32.xlu0 %v608, 112
        %v827 = vpop.permute.xlu0 %826
        %v828 = vsel %vm643, %v825, 0
        %v830 = vsel %vm643, %v827, 0
        %832 = vmatpush.xpose.msra.mxu0 0.0
        %833 = vmatpush.xpose.msra.mxu0 0.0
        %834 = vmatpush.xpose.msra.mxu0 0.0
        %835 = vmatpush.xpose.msra.mxu0 0.0
        %836 = vmatpush.xpose.msra.mxu0 0.0
        %837 = vmatpush.xpose.msra.mxu0 0.0
        %838 = vmatpush.xpose.msra.mxu0 0.0
        %839 = vmatpush.xpose.msra.mxu0 0.0
        %840 = vmatpush.xpose.msra.mxu0 0.0
        %841 = vmatpush.xpose.msra.mxu0 0.0
        %842 = vmatpush.xpose.msra.mxu0 0.0
        %843 = vmatpush.xpose.msra.mxu0 0.0
        %844 = vmatpush.xpose.msra.mxu0 0.0
        %845 = vmatpush.xpose.msra.mxu0 0.0
        %846 = vmatpush.xpose.msra.mxu0 0.0
        %847 = vmatpush.xpose.msra.mxu0 %v830
        %848 = vmatmul.f32.gmra.mxu0 %v828
        %v849 = vpop.f32.mrf.mxu0
        %v850 = vadd.f32 0.0, %v849
        %851 = vdwg.mxu0
        %v852 = vsel %vm643, %v850, -inf
        %853 = vmax.xlane.f32.xlu0 %v852
        %v854 = vpop.xlane.xlu0 %853
        %v855 = vsub.f32 %v850, %v854
        %v856 = vmul.f32 %v855, 1.442695
        %v857 = vpow.pop %v856
        %v858 = vsel %vm643, %v857, 0.0
        %859 = vadd.xlane.f32.xlu0 %v858
        %v860 = vpop.xlane.xlu0 %859
        %v861 = vrcp.pop %v860
        %v862 = vmul.f32 %v860, %v861
        %v863 = vsub.f32 2.0, %v862
        %v864 = vmul.f32 %v861, %v863
        %v865 = vmul.f32 %v857, %v864
        %866 = vrot.lane.b32.xlu0 %v640, 112
        %v867 = vpop.permute.xlu0 %866
        %v870 = vsel %vm643, %v865, 0
        %872 = vmatpush.msra.mxu0 0.0
        %873 = vmatpush.msra.mxu0 0.0
        %874 = vmatpush.msra.mxu0 0.0
        %875 = vmatpush.msra.mxu0 0.0
        %876 = vmatpush.msra.mxu0 0.0
        %877 = vmatpush.msra.mxu0 0.0
        %878 = vmatpush.msra.mxu0 0.0
        %879 = vmatpush.msra.mxu0 0.0
        %880 = vmatpush.msra.mxu0 0.0
        %881 = vmatpush.msra.mxu0 0.0
        %882 = vmatpush.msra.mxu0 0.0
        %883 = vmatpush.msra.mxu0 0.0
        %884 = vmatpush.msra.mxu0 0.0
        %885 = vmatpush.msra.mxu0 0.0
        %886 = vmatpush.msra.mxu0 0.0
        %887 = vmatpush.msra.mxu0 %v867
        %888 = vmatmul.f32.gmra.mxu0 %v870
        %v889 = vpop.f32.mrf.mxu0
        %v890 = vadd.f32 0.0, %v889
        %891 = vdwg.mxu0
        %v892 = vld [vmem:[#allocation13 + $0x10] sm:$0xff]
        %v894 = vsel %vm643, %v890, 0
        %896 = vmatpush.msra.mxu0 0.0
        %897 = vmatpush.msra.mxu0 0.0
        %898 = vmatpush.msra.mxu0 0.0
        %899 = vmatpush.msra.mxu0 0.0
        %900 = vmatpush.msra.mxu0 0.0
        %901 = vmatpush.msra.mxu0 0.0
        %902 = vmatpush.msra.mxu0 0.0
        %903 = vmatpush.msra.mxu0 0.0
        %904 = vmatpush.msra.mxu0 0.0
        %905 = vmatpush.msra.mxu0 0.0
        %906 = vmatpush.msra.mxu0 0.0
        %907 = vmatpush.msra.mxu0 0.0
        %908 = vmatpush.msra.mxu0 0.0
        %909 = vmatpush.msra.mxu0 0.0
        %910 = vmatpush.msra.mxu0 0.0
        %911 = vmatpush.msra.mxu0 %v892
        %912 = vmatmul.f32.gmra.mxu0 %v894
        %v913 = vpop.f32.mrf.mxu0
        %v914 = vadd.f32 0.0, %v913
        %915 = vdwg.mxu0
        %v916 = vadd.f32 %v822, %v914
        %917 = vrot.lane.b32.xlu0 %v642, 104
        %v918 = vpop.permute.xlu0 %917
        %919 = vrot.lane.b32.xlu0 %v608, 104
        %v920 = vpop.permute.xlu0 %919
        %v921 = vsel %vm643, %v918, 0
        %v923 = vsel %vm643, %v920, 0
        %925 = vmatpush.xpose.msra.mxu0 0.0
        %926 = vmatpush.xpose.msra.mxu0 0.0
        %927 = vmatpush.xpose.msra.mxu0 0.0
        %928 = vmatpush.xpose.msra.mxu0 0.0
        %929 = vmatpush.xpose.msra.mxu0 0.0
        %930 = vmatpush.xpose.msra.mxu0 0.0
        %931 = vmatpush.xpose.msra.mxu0 0.0
        %932 = vmatpush.xpose.msra.mxu0 0.0
        %933 = vmatpush.xpose.msra.mxu0 0.0
        %934 = vmatpush.xpose.msra.mxu0 0.0
        %935 = vmatpush.xpose.msra.mxu0 0.0
        %936 = vmatpush.xpose.msra.mxu0 0.0
        %937 = vmatpush.xpose.msra.mxu0 0.0
        %938 = vmatpush.xpose.msra.mxu0 0.0
        %939 = vmatpush.xpose.msra.mxu0 0.0
        %940 = vmatpush.xpose.msra.mxu0 %v923
        %941 = vmatmul.f32.gmra.mxu0 %v921
        %v942 = vpop.f32.mrf.mxu0
        %v943 = vadd.f32 0.0, %v942
        %944 = vdwg.mxu0
        %v945 = vsel %vm643, %v943, -inf
        %946 = vmax.xlane.f32.xlu0 %v945
        %v947 = vpop.xlane.xlu0 %946
        %v948 = vsub.f32 %v943, %v947
        %v949 = vmul.f32 %v948, 1.442695
        %v950 = vpow.pop %v949
        %v951 = vsel %vm643, %v950, 0.0
        %952 = vadd.xlane.f32.xlu0 %v951
        %v953 = vpop.xlane.xlu0 %952
        %v954 = vrcp.pop %v953
        %v955 = vmul.f32 %v953, %v954
        %v956 = vsub.f32 2.0, %v955
        %v957 = vmul.f32 %v954, %v956
        %v958 = vmul.f32 %v950, %v957
        %959 = vrot.lane.b32.xlu0 %v640, 104
        %v960 = vpop.permute.xlu0 %959
        %v963 = vsel %vm643, %v958, 0
        %965 = vmatpush.msra.mxu0 0.0
        %966 = vmatpush.msra.mxu0 0.0
        %967 = vmatpush.msra.mxu0 0.0
        %968 = vmatpush.msra.mxu0 0.0
        %969 = vmatpush.msra.mxu0 0.0
        %970 = vmatpush.msra.mxu0 0.0
        %971 = vmatpush.msra.mxu0 0.0
        %972 = vmatpush.msra.mxu0 0.0
        %973 = vmatpush.msra.mxu0 0.0
        %974 = vmatpush.msra.mxu0 0.0
        %975 = vmatpush.msra.mxu0 0.0
        %976 = vmatpush.msra.mxu0 0.0
        %977 = vmatpush.msra.mxu0 0.0
        %978 = vmatpush.msra.mxu0 0.0
        %979 = vmatpush.msra.mxu0 0.0
        %980 = vmatpush.msra.mxu0 %v960
        %981 = vmatmul.f32.gmra.mxu0 %v963
        %v982 = vpop.f32.mrf.mxu0
        %v983 = vadd.f32 0.0, %v982
        %984 = vdwg.mxu0
        %v985 = vld [vmem:[#allocation13 + $0x18] sm:$0xff]
        %v987 = vsel %vm643, %v983, 0
        %989 = vmatpush.msra.mxu0 0.0
        %990 = vmatpush.msra.mxu0 0.0
        %991 = vmatpush.msra.mxu0 0.0
        %992 = vmatpush.msra.mxu0 0.0
        %993 = vmatpush.msra.mxu0 0.0
        %994 = vmatpush.msra.mxu0 0.0
        %995 = vmatpush.msra.mxu0 0.0
        %996 = vmatpush.msra.mxu0 0.0
        %997 = vmatpush.msra.mxu0 0.0
        %998 = vmatpush.msra.mxu0 0.0
        %999 = vmatpush.msra.mxu0 0.0
        %1000 = vmatpush.msra.mxu0 0.0
        %1001 = vmatpush.msra.mxu0 0.0
        %1002 = vmatpush.msra.mxu0 0.0
        %1003 = vmatpush.msra.mxu0 0.0
        %1004 = vmatpush.msra.mxu0 %v985
        %1005 = vmatmul.f32.gmra.mxu0 %v987
        %v1006 = vpop.f32.mrf.mxu0
        %v1007 = vadd.f32 0.0, %v1006
        %1008 = vdwg.mxu0
        %v1009 = vadd.f32 %v916, %v1007
        %v1010 = vld [vmem:[%s10] sm:$0x1]
        %v1012 = vperm.slane %v1010, 0
        %v1014 = vadd.f32 %v1009, %v1012
        %1015 = vst.msk [vmem:[%s544] sm:$0xff] %vm554, %v1014
        %s1016 = sand.u32 %s287, 1
        %s1017 = scalar_lea.sflag [#allocation4], %s1016
        %s1018 = sand.u32 %s287, 1
        %s1019 = smul.addr %s1018, 8
        %s1020 = scalar_lea.vmem [#allocation14], %s1019
        // Predicated region
        $region93: #{tpu_custom_call.1} parent=63 // pred_check
          %p1021 = pneg %p297
        $region94: #{tpu_custom_call.1} parent=63 // pred_check_branch
          %1023 = sbr.rel (%p1021) target = $region96
        $region95: #{tpu_custom_call.1} parent=63 // pred_region
          %1025 = vsyncadd %s1017, 0
          %s1026 = smul.addr %s33, 8
          %s1027 = scalar_lea.hbm %s11, %s1026
          %s1029 = sshll.u32 %s1020, 4
          %s1030 = int_to_ptr.vmem [resolvable:$true] %s1029
          %s1031 = sshll.u32 %s1027, 4
          %s1032 = int_to_ptr.hbm [resolvable:$true] %s1031
          %1034 = dma.vmem_to_hbm [thread:$0]  %s1030, 128, %s1032, %s1017
        $region96: #{tpu_custom_call.1} parent=63 // pred_fallthru
          _
      $region64: #{tpu_custom_call.1} parent=5 // pred_fallthru
        _
      %p1035 = scmp.le.s32.totalorder 2, %s28
      // Predicated region
      $region97: #{tpu_custom_call.1} parent=5 // pred_check
        %p1036 = pneg %p1035
      $region98: #{tpu_custom_call.1} parent=5 // pred_check_branch
        %1038 = sbr.rel (%p1036) target = $region100
      $region99: #{tpu_custom_call.1} parent=5 // pred_region
        %s1039 = ssub.s32 %s28, 2
        // Predicated region
        $region101: #{tpu_custom_call.1} parent=99 // pred_check
          %p1040 = pneg %p303
        $region102: #{tpu_custom_call.1} parent=99 // pred_check_branch
          %1042 = sbr.rel (%p1040) target = $region104
        $region103: #{tpu_custom_call.1} parent=99 // pred_region
          %s1043 = sand.u32 %s288, 1
          %s1044 = scalar_lea.sflag [#allocation4], %s1043
          %s1045 = sand.u32 %s288, 1
          %s1046 = smul.addr %s1045, 8
          %s1047 = scalar_lea.vmem [#allocation14], %s1046
          %1049 = dma.done %s1044, 128
        $region104: #{tpu_custom_call.1} parent=99 // pred_fallthru
          _
      $region100: #{tpu_custom_call.1} parent=5 // pred_fallthru
        _
    $region6: #{tpu_custom_call.1} parent=1 // loop_footer
      %s32 = sadd.s32 1, %s28
    $region7: #{tpu_custom_call.1} parent=1 // loop_footer_branch
      %27 = sbr.rel target = $region3
    $region8: #{tpu_custom_call.1} parent=1 // loop_exit
      _
    %1050 = vsyncpa [#allocation3], 1
    %s1051 = scalar_lea.sflag [#allocation3], 1
    %1052 = vsyncpa %s1051, 1
    %1053 = vsyncpa [#allocation6], 1
    %s1054 = scalar_lea.sflag [#allocation6], 1
    %1055 = vsyncpa %s1054, 1
    %1056 = vsyncpa [#allocation9], 1
    %1057 = vsyncpa [#allocation12], 1
    %1058 = vsyncpa [#allocation4], 1
    %s1059 = scalar_lea.sflag [#allocation4], 1
    %1060 = vsyncpa %s1059, 1

</llo_original>
